<compile_context>
chip_gen: v6e
topology: v6e:2x2x1
jax: 0.10.0
libtpu: 0.0.40
codegen_flags: <defaults>
</compile_context>

<pallas_src>
import functools

import jax
import jax.numpy as jnp
from jax.experimental import pallas as pl
from jax.experimental.pallas import tpu as pltpu


def _ann_kernel(xt_ref, w1_ref, w2_ref, b2_ref, o_ref):
    # xt_ref: (Dp, TB) lane-dense over batch (row D is the all-ones bias row)
    # w1_ref: (H, Dp)  -- lin1 weights with b1 folded into column D
    # w2_ref: (1, H)   -- lin2 weights (row vector)
    # b2_ref: (1, 1)   -- lin2 bias, SMEM scalar
    # o_ref : (1, TB)  -- lane-dense output tile
    xt = xt_ref[...]

    # lin1 (+ bias via the augmented ones-row) on the MXU: (H, Dp) @ (Dp, TB).
    h = jnp.dot(w1_ref[...], xt, preferred_element_type=jnp.float32)

    # activation = sigmoid (EUP).
    h = jax.nn.sigmoid(h)

    # dropout(p=0.3): identity in eval/inference mode.
    # TODO(synk): training-mode dropout would need pltpu.prng_seed + stateful_bernoulli.

    # lin2 on the MXU as (1, H) @ (H, TB) -> lane-dense (1, TB).
    y = jnp.dot(w2_ref[...], h, preferred_element_type=jnp.float32)
    o_ref[...] = (y + b2_ref[0, 0]).astype(o_ref.dtype)


def _round_up(n, m):
    return ((n + m - 1) // m) * m


@functools.partial(jax.jit, static_argnames=("block_batch",))
def ann_forward(x, w1, b1, w2, b2, *, block_batch=4096):
    """Eval-mode forward of ANN.

    x:  (B, D) float32
    w1: (H, D), b1: (H,), w2: (1, H), b2: (1,)   (PyTorch Linear layout)
    returns (B, 1)
    """
    B, D = x.shape
    H = w1.shape[0]

    # Contraction dim padded to a sublane multiple; slot D carries the ones-row
    # that folds b1 into the lin1 matmul for free (the MXU pads K anyway).
    Dp = max(8, _round_up(D + 1, 8))

    # Lane-dense batch tile: multiple of 128, capped so there are >= 2 grid
    # steps when possible (keeps both TensorCores busy on v7x).
    TB = max(128, min(_round_up(block_batch, 128), _round_up(-(-B // 2), 128)))
    Bp = _round_up(B, TB)
    num_tiles = Bp // TB

    # x^T augmented: rows 0..D-1 = features, row D = 1.0 (bias), rest zeros.
    xt = jnp.zeros((Dp, Bp), x.dtype)
    xt = xt.at[:D, :B].set(x.T)
    xt = xt.at[D, :].set(jnp.asarray(1.0, x.dtype))

    # w1 augmented: columns 0..D-1 = weights, column D = b1, rest zeros.
    w1_aug = jnp.zeros((H, Dp), w1.dtype)
    w1_aug = w1_aug.at[:, :D].set(w1)
    w1_aug = w1_aug.at[:, D].set(b1)

    w2_t = w2.reshape(1, H)
    b2_2d = b2.reshape(1, 1).astype(jnp.float32)

    cost = pl.CostEstimate(
        flops=2 * Bp * H * Dp + 2 * Bp * H,            # lin1 + lin2
        transcendentals=Bp * H,                        # sigmoid
        bytes_accessed=Bp * Dp * 4 + Bp * 4 + (H * Dp + H + 1) * 4,
    )

    out = pl.pallas_call(
        _ann_kernel,
        out_shape=jax.ShapeDtypeStruct((1, Bp), x.dtype),
        grid=(num_tiles,),
        in_specs=[
            pl.BlockSpec((Dp, TB), lambda i: (0, i)),   # x^T: streamed, lane-dense
            pl.BlockSpec((H, Dp), lambda i: (0, 0)),    # w1_aug: VMEM-resident
            pl.BlockSpec((1, H), lambda i: (0, 0)),     # w2^T: VMEM-resident
            pl.BlockSpec(memory_space=pltpu.MemorySpace.SMEM),  # b2 scalar
        ],
        out_specs=pl.BlockSpec((1, TB), lambda i: (0, i)),      # lane-dense output
        compiler_params=pltpu.CompilerParams(
            # On v7x, pltpu.CORE_PARALLEL would shard these grid steps across
            # the two TensorCores; "parallel" is the portable choice.
            dimension_semantics=("parallel",),
        ),
        cost_estimate=cost,
    )(xt, w1_aug, w2_t, b2_2d)

    return out.reshape(Bp, 1)[:B]


def init_params(key, input_dim=5, hidden_dim=128):
    """Deterministic init mimicking PyTorch Linear default (uniform +/- 1/sqrt(fan_in))."""
    k1, k2, k3, k4 = jax.random.split(key, 4)
    bound1 = 1.0 / (input_dim ** 0.5)
    bound2 = 1.0 / (hidden_dim ** 0.5)
    # PyTorch layout: weight [out, in]
    w1 = jax.random.uniform(k1, (hidden_dim, input_dim), jnp.float32, -bound1, bound1)
    b1 = jax.random.uniform(k2, (hidden_dim,), jnp.float32, -bound1, bound1)
    w2 = jax.random.uniform(k3, (1, hidden_dim), jnp.float32, -bound2, bound2)
    b2 = jax.random.uniform(k4, (1,), jnp.float32, -bound2, bound2)
    return w1, b1, w2, b2


if __name__ == "__main__":
    key = jax.random.PRNGKey(0)
    kx, kp = jax.random.split(key)

    B, D, H = 512, 5, 128
    x = jax.random.normal(kx, (B, D), jnp.float32)
    w1, b1, w2, b2 = init_params(kp, input_dim=D, hidden_dim=H)

    # reference in plain JAX (eval mode: dropout = identity)
    ref = jax.nn.sigmoid(x @ w1.T + b1) @ w2.T + b2

    # default tiling: TB=256 -> 2 grid steps (pipelined / megacore path)
    out = jax.block_until_ready(ann_forward(x, w1, b1, w2, b2))
    assert out.shape == (B, 1), out.shape
    assert jnp.allclose(out, ref, atol=1e-4, rtol=1e-4), float(jnp.max(jnp.abs(out - ref)))

    # batch that is not a tile multiple (padding path, single tile)
    Bo = 77
    out2 = jax.block_until_ready(ann_forward(x[:Bo], w1, b1, w2, b2))
    ref2 = jax.nn.sigmoid(x[:Bo] @ w1.T + b1) @ w2.T + b2
    assert out2.shape == (Bo, 1), out2.shape
    assert jnp.allclose(out2, ref2, atol=1e-4, rtol=1e-4)

    # small explicit tile exercising a deeper (4-step) grid
    out3 = jax.block_until_ready(ann_forward(x, w1, b1, w2, b2, block_batch=128))
    assert jnp.allclose(out3, ref, atol=1e-4, rtol=1e-4)

    print("KERNEL_OK")
</pallas_src>

<mosaic_0001>
module attributes {stable_mosaic.version = 11 : i64} {
  func.func @_ann_kernel(%arg0: i32, %arg1: memref<8x256xf32, #tpu.memory_space<vmem>>, %arg2: memref<128x8xf32, #tpu.memory_space<vmem>>, %arg3: memref<1x128xf32, #tpu.memory_space<vmem>>, %arg4: memref<1x1xf32, #tpu.memory_space<smem>>, %arg5: memref<1x256xf32, #tpu.memory_space<vmem>>) attributes {dimension_semantics = [#tpu.dimension_semantics<parallel>], iteration_bounds = array<i64: 2>, scalar_prefetch = 0 : i64, scratch_operands = 0 : i64, tpu.core_type = #tpu.core_type<tc>, window_params = [{transform_indices = @transform_0, window_bounds = array<i64: 8, 256>}, {pipeline_mode = #tpu.pipeline_mode<synchronous>, transform_indices = @transform_1, window_bounds = array<i64: 128, 8>}, {pipeline_mode = #tpu.pipeline_mode<synchronous>, transform_indices = @transform_2, window_bounds = array<i64: 1, 128>}, {transform_indices = @transform_3, window_bounds = array<i64: 1, 1>}, {transform_indices = @transform_4, window_bounds = array<i64: 1, 256>}]} {
    %c0 = arith.constant 0 : index
    %c0_0 = arith.constant 0 : index
    %0 = vector.load %arg1[%c0, %c0_0] : memref<8x256xf32, #tpu.memory_space<vmem>>, vector<8x256xf32>
    %c0_1 = arith.constant 0 : index
    %c0_2 = arith.constant 0 : index
    %1 = vector.load %arg2[%c0_1, %c0_2] : memref<128x8xf32, #tpu.memory_space<vmem>>, vector<128x8xf32>
    %cst = arith.constant dense<0.000000e+00> : vector<128x256xf32>
    %2 = tpu.matmul %1, %0, %cst {dimension_numbers = #tpu.dot_dimension_numbers<[1], [0], [0], [1], [0, 0, 1, 1], [], []>} : vector<128x8xf32>, vector<8x256xf32>, vector<128x256xf32> -> vector<128x256xf32>
    %3 = arith.negf %2 : vector<128x256xf32>
    %4 = math.exp %3 : vector<128x256xf32>
    %cst_3 = arith.constant 1.000000e+00 : f32
    %5 = vector.broadcast %cst_3 : f32 to vector<128x256xf32>
    %6 = arith.addf %5, %4 : vector<128x256xf32>
    %7 = arith.divf %5, %6 : vector<128x256xf32>
    %c0_4 = arith.constant 0 : index
    %c0_5 = arith.constant 0 : index
    %8 = vector.load %arg3[%c0_4, %c0_5] : memref<1x128xf32, #tpu.memory_space<vmem>>, vector<1x128xf32>
    %cst_6 = arith.constant dense<0.000000e+00> : vector<1x256xf32>
    %9 = tpu.matmul %8, %7, %cst_6 {dimension_numbers = #tpu.dot_dimension_numbers<[1], [0], [0], [1], [0, 0, 1, 1], [], []>} : vector<1x128xf32>, vector<128x256xf32>, vector<1x256xf32> -> vector<1x256xf32>
    %c0_7 = arith.constant 0 : index
    %c0_8 = arith.constant 0 : index
    %10 = memref.load %arg4[%c0_7, %c0_8] : memref<1x1xf32, #tpu.memory_space<smem>>
    %11 = vector.broadcast %10 : f32 to vector<1x256xf32>
    %12 = arith.addf %9, %11 : vector<1x256xf32>
    %c0_9 = arith.constant 0 : index
    %c0_10 = arith.constant 0 : index
    %13 = vector.load %arg5[%c0_9, %c0_10] : memref<1x256xf32, #tpu.memory_space<vmem>>, vector<1x256xf32>
    tpu.vector_store %arg5[%c0_9, %c0_10], %12 {strides = array<i32>} : memref<1x256xf32, #tpu.memory_space<vmem>>, vector<1x256xf32>,
    return
  }
  func.func @transform_0(%arg0: i32) -> (i32, i32) {
    %c0_i32 = arith.constant 0 : i32
    %c0_i32_0 = arith.constant 0 : i32
    return %c0_i32, %arg0 : i32, i32
  }
  func.func @transform_1(%arg0: i32) -> (i32, i32) {
    %c0_i32 = arith.constant 0 : i32
    %c0_i32_0 = arith.constant 0 : i32
    %c0_i32_1 = arith.constant 0 : i32
    return %c0_i32, %c0_i32_0 : i32, i32
  }
  func.func @transform_2(%arg0: i32) -> (i32, i32) {
    %c0_i32 = arith.constant 0 : i32
    %c0_i32_0 = arith.constant 0 : i32
    %c0_i32_1 = arith.constant 0 : i32
    return %c0_i32, %c0_i32_0 : i32, i32
  }
  func.func @transform_3(%arg0: i32) -> (i32, i32) {
    %c0_i32 = arith.constant 0 : i32
    %c0_i32_0 = arith.constant 0 : i32
    %c0_i32_1 = arith.constant 0 : i32
    return %c0_i32, %c0_i32_0 : i32, i32
  }
  func.func @transform_4(%arg0: i32) -> (i32, i32) {
    %c0_i32 = arith.constant 0 : i32
    %c0_i32_0 = arith.constant 0 : i32
    return %c0_i32, %arg0 : i32, i32
  }
}

</mosaic_0001>

<llo_original>
// kernel: ann_forward.1
$region0: #{ann_forward.1}
  #allocation0 [shape = 'u32[]', space=smem, size = 0x4, offset = 0x4, fixed_abs, tag = 'smem constant byte address 0x4 - core index']
  #allocation1 [shape = 'u32[144,128]{1,0:T(1,128)}', space=vmem, size = 0x12000, scoped, tag = 'internal scratch']
  #allocation2 [shape = 'f32[1,1]{1,0:T(1,128)S(6)}', space=smem, size = 0x200, scoped, tag = 'scoped memory for ann_forward.1']
  %s0 = inlined_call_operand.vmem [shape: f32[8,512], index: 0, kind: input, shape index: {}]
  %s1 = inlined_call_operand.vmem [shape: f32[128,8], index: 1, kind: input, shape index: {}]
  %s2 = inlined_call_operand.vmem [shape: f32[1,128], index: 2, kind: input, shape index: {}]
  %s3 = inlined_call_operand.<no memory space> [shape: f32[1,1], index: 3, kind: input, shape index: {}]
  %s4 = inlined_call_operand.hbm [shape: f32[1,512], index: 4, kind: output, shape index: {}]
  %s5 = sld [smem:[#allocation0]]
  $region49: #{ann_forward.1} parent=0
    _
  %s7 = ssub.s32 1, %s5
  %s8 = scalar_select 0, %s7, %s5
  %9 = sst [smem:[#allocation2]] %s3
  $region1: #{ann_forward.1} parent=0
    #allocation3 [shape = 'u8[2048]{0}', space=vmem, size = 0x800, scoped, tag = 'output window, operand 0']
    #allocation4 [shape = 's32[2]{0}', space=sflag, size = 0x8, scoped, tag = 'scoped memory for ann_forward.1']
    %10 = vsyncpa [#allocation4], 0
    %s11 = scalar_lea.sflag [#allocation4], 1
    %12 = vsyncpa %s11, 0
    loop: start=0, step=1, limit=4
    $region2: #{ann_forward.1} parent=1 // loop_pre_header
      _
    $region3: #{ann_forward.1} parent=1 // loop_header
      %s14 = sphi 0, %s18
      %p15 = scmp.ge.s32.totalorder %s14, 4
      %s24 = sphi 0, %s26
      %s27 = sphi 0, %s24
      %s28 = sphi 0, %s27
      %s44 = sphi 0, %s28
      %s48 = sphi 0, %s48
      %s50 = sphi 0, %s48
      %s51 = sphi 0, %s50
      %s65 = sphi 0, %s51
      %s69 = sphi 0, %s69
      %s71 = sphi 0, %s69
      %s72 = sphi 0, %s71
      %s86 = sphi 0, %s72
      %s90 = sphi 0, %s90
      %s92 = sphi 0, %s90
      %s93 = sphi 0, %s92
      %s107 = sphi 0, %s93
      %s113 = sphi 0, %s115
      %s116 = sphi 0, %s113
      %s117 = sphi 0, %s116
      %s133 = sphi 0, %s117
    $region4: #{ann_forward.1} parent=1 // loop_header_branch
      %17 = sbr.rel (%p15) target = $region8
    $region5: #{ann_forward.1} parent=1 // loop_body
      %s19 = ssub.s32 %s14, 1
      %s20 = ssub.s32 %s14, 2
      %s21 = sadd.s32 %s14, 1
      %s22 = ssub.s32 %s14, %s21
      %p23 = scmp.eq.s32.totalorder %s22, 0
      %s25 = sadd.s32 %s24, 1
      %s26 = scalar_select %p23, %s24, %s25
      %p29 = pneg %p23
      %p30 = scmp.eq.s32.totalorder %s14, 1
      %p31 = por %p29, %p30
      %p32 = scmp.ne.s32.totalorder %s24, %s27
      %p33 = scmp.eq.s32.totalorder %s14, 0
      %p34 = por %p32, %p33
      %p35 = scmp.ne.s32.totalorder %s24, %s27
      %p36 = scmp.eq.s32.totalorder %s19, 1
      %p37 = por %p35, %p36
      %p38 = scmp.ne.s32.totalorder %s27, %s28
      %p39 = scmp.eq.s32.totalorder %s19, 0
      %p40 = por %p38, %p39
      %p41 = scmp.ne.s32.totalorder %s27, %s28
      %p42 = scmp.eq.s32.totalorder %s20, 1
      %p43 = por %p41, %p42
      %p45 = scmp.ne.s32.totalorder %s28, %s44
      %p46 = scmp.eq.s32.totalorder %s20, 0
      %p47 = por %p45, %p46
      %s49 = sadd.s32 %s48, 1
      %p52 = scmp.eq.s32.totalorder %s14, 1
      %p53 = scmp.ne.s32.totalorder %s48, %s50
      %p54 = scmp.eq.s32.totalorder %s14, 0
      %p55 = por %p53, %p54
      %p56 = scmp.ne.s32.totalorder %s48, %s50
      %p57 = scmp.eq.s32.totalorder %s19, 1
      %p58 = por %p56, %p57
      %p59 = scmp.ne.s32.totalorder %s50, %s51
      %p60 = scmp.eq.s32.totalorder %s19, 0
      %p61 = por %p59, %p60
      %p62 = scmp.ne.s32.totalorder %s50, %s51
      %p63 = scmp.eq.s32.totalorder %s20, 1
      %p64 = por %p62, %p63
      %p66 = scmp.ne.s32.totalorder %s51, %s65
      %p67 = scmp.eq.s32.totalorder %s20, 0
      %p68 = por %p66, %p67
      %s70 = sadd.s32 %s69, 1
      %p73 = scmp.eq.s32.totalorder %s14, 1
      %p74 = scmp.ne.s32.totalorder %s69, %s71
      %p75 = scmp.eq.s32.totalorder %s14, 0
      %p76 = por %p74, %p75
      %p77 = scmp.ne.s32.totalorder %s69, %s71
      %p78 = scmp.eq.s32.totalorder %s19, 1
      %p79 = por %p77, %p78
      %p80 = scmp.ne.s32.totalorder %s71, %s72
      %p81 = scmp.eq.s32.totalorder %s19, 0
      %p82 = por %p80, %p81
      %p83 = scmp.ne.s32.totalorder %s71, %s72
      %p84 = scmp.eq.s32.totalorder %s20, 1
      %p85 = por %p83, %p84
      %p87 = scmp.ne.s32.totalorder %s72, %s86
      %p88 = scmp.eq.s32.totalorder %s20, 0
      %p89 = por %p87, %p88
      %s91 = sadd.s32 %s90, 1
      %p94 = scmp.eq.s32.totalorder %s14, 1
      %p95 = scmp.ne.s32.totalorder %s90, %s92
      %p96 = scmp.eq.s32.totalorder %s14, 0
      %p97 = por %p95, %p96
      %p98 = scmp.ne.s32.totalorder %s90, %s92
      %p99 = scmp.eq.s32.totalorder %s19, 1
      %p100 = por %p98, %p99
      %p101 = scmp.ne.s32.totalorder %s92, %s93
      %p102 = scmp.eq.s32.totalorder %s19, 0
      %p103 = por %p101, %p102
      %p104 = scmp.ne.s32.totalorder %s92, %s93
      %p105 = scmp.eq.s32.totalorder %s20, 1
      %p106 = por %p104, %p105
      %p108 = scmp.ne.s32.totalorder %s93, %s107
      %p109 = scmp.eq.s32.totalorder %s20, 0
      %p110 = por %p108, %p109
      %s111 = ssub.s32 %s14, %s21
      %p112 = scmp.eq.s32.totalorder %s111, 0
      %s114 = sadd.s32 %s113, 1
      %s115 = scalar_select %p112, %s113, %s114
      %p118 = pneg %p112
      %p119 = scmp.eq.s32.totalorder %s14, 1
      %p120 = por %p118, %p119
      %p121 = scmp.ne.s32.totalorder %s113, %s116
      %p122 = scmp.eq.s32.totalorder %s14, 0
      %p123 = por %p121, %p122
      %p124 = scmp.ne.s32.totalorder %s113, %s116
      %p125 = scmp.eq.s32.totalorder %s19, 1
      %p126 = por %p124, %p125
      %p127 = scmp.ne.s32.totalorder %s116, %s117
      %p128 = scmp.eq.s32.totalorder %s19, 0
      %p129 = por %p127, %p128
      %p130 = scmp.ne.s32.totalorder %s116, %s117
      %p131 = scmp.eq.s32.totalorder %s20, 1
      %p132 = por %p130, %p131
      %p134 = scmp.ne.s32.totalorder %s117, %s133
      %p135 = scmp.eq.s32.totalorder %s20, 0
      %p136 = por %p134, %p135
      %p137 = scmp.le.s32.totalorder 1, %s14
      %p138 = scmp.lt.s32.totalorder %s14, 3
      %p139 = pnand %p137, %p138
      %p140 = pneg %p139
      // Predicated region
      $region9: #{ann_forward.1} parent=5 // pred_check
        _
      $region10: #{ann_forward.1} parent=5 // pred_check_branch
        %142 = sbr.rel (%p139) target = $region12
      $region11: #{ann_forward.1} parent=5 // pred_region
        %s143 = ssub.s32 %s14, 1
        // Predicated region
        $region13: #{ann_forward.1} parent=11 // pred_check
          %p144 = pneg %p61
        $region14: #{ann_forward.1} parent=11 // pred_check_branch
          %146 = sbr.rel (%p144) target = $region16
        $region15: #{ann_forward.1} parent=11 // pred_region
          _
        $region16: #{ann_forward.1} parent=11 // pred_fallthru
          _
        // Predicated region
        $region17: #{ann_forward.1} parent=11 // pred_check
          %p147 = pneg %p82
        $region18: #{ann_forward.1} parent=11 // pred_check_branch
          %149 = sbr.rel (%p147) target = $region20
        $region19: #{ann_forward.1} parent=11 // pred_region
          _
        $region20: #{ann_forward.1} parent=11 // pred_fallthru
          _
        // Predicated region
        $region21: #{ann_forward.1} parent=11 // pred_check
          %p150 = pneg %p103
        $region22: #{ann_forward.1} parent=11 // pred_check_branch
          %152 = sbr.rel (%p150) target = $region24
        $region23: #{ann_forward.1} parent=11 // pred_region
          _
        $region24: #{ann_forward.1} parent=11 // pred_fallthru
          _
      $region12: #{ann_forward.1} parent=5 // pred_fallthru
        _
      %p153 = scmp.lt.s32.totalorder %s14, 2
      // Predicated region
      $region25: #{ann_forward.1} parent=5 // pred_check
        %p154 = pneg %p153
      $region26: #{ann_forward.1} parent=5 // pred_check_branch
        %156 = sbr.rel (%p154) target = $region28
      $region27: #{ann_forward.1} parent=5 // pred_region
        // Predicated region
        $region29: #{ann_forward.1} parent=27 // pred_check
          %p157 = pneg %p34
        $region30: #{ann_forward.1} parent=27 // pred_check_branch
          %159 = sbr.rel (%p157) target = $region32
        $region31: #{ann_forward.1} parent=27 // pred_region
          %s160 = smul.u32 2, %s14
          %p161 = scmp.lt.s32.totalorder %s160, 3
          %s162 = scalar_select %p161, %s160, 3
          %s163 = smul.addr %s162, 8
          %s164 = scalar_lea.vmem %s0, %s163
          %s165 = smul.u32 2, %s14
        $region32: #{ann_forward.1} parent=27 // pred_fallthru
          _
      $region28: #{ann_forward.1} parent=5 // pred_fallthru
        _
      %p166 = scmp.le.s32.totalorder 1, %s14
      %p167 = scmp.lt.s32.totalorder %s14, 3
      %p168 = pnand %p166, %p167
      %p169 = pneg %p168
      // Predicated region
      $region33: #{ann_forward.1} parent=5 // pred_check
        _
      $region34: #{ann_forward.1} parent=5 // pred_check_branch
        %171 = sbr.rel (%p168) target = $region36
      $region35: #{ann_forward.1} parent=5 // pred_region
        %s172 = ssub.s32 %s14, 1
        %s173 = smul.u32 2, %s19
        %p174 = scmp.lt.s32.totalorder %s173, 3
        %s175 = scalar_select %p174, %s173, 3
        %s176 = smul.addr %s175, 8
        %s177 = scalar_lea.vmem %s0, %s176
        %p178 = pneg %p40
        %p179 = pneg %p37
        %p180 = pneg %p61
        %p181 = pneg %p58
        %p182 = pneg %p82
        %p183 = pneg %p79
        %p184 = pneg %p103
        %p185 = pneg %p100
        %p186 = pneg %p129
        %p187 = pneg %p126
        %s188 = sand.u32 %s116, 1
        %s189 = scalar_lea.sflag [#allocation4], %s188
        %s190 = sand.u32 %s116, 1
        %s191 = smul.addr %s190, 2
        %s192 = scalar_lea.vmem [#allocation3], %s191
        %s193 = smul.u32 2, %s19
        %p194 = scmp.lt.s32.totalorder %s193, 3
        %s195 = scalar_select %p194, %s193, 3
        %s196 = smul.addr %s195, 8
        %s197 = scalar_lea.vmem %s0, %s196
        %s198 = smul.u32 2, %s19
        %s199 = smul.u32 2, %s19
        %v200 = vld [vmem:[%s197] sm:$0xff]
        %v201 = vld [vmem:[%s197 + $0x8] sm:$0xff]
        %v202 = vld [vmem:[%s1] sm:$0xff]
        %v203 = vld [vmem:[%s1 + $0x8] sm:$0xff]
        %v204 = vld [vmem:[%s1 + $0x10] sm:$0xff]
        %v205 = vld [vmem:[%s1 + $0x18] sm:$0xff]
        %v206 = vld [vmem:[%s1 + $0x20] sm:$0xff]
        %v207 = vld [vmem:[%s1 + $0x28] sm:$0xff]
        %v208 = vld [vmem:[%s1 + $0x30] sm:$0xff]
        %v209 = vld [vmem:[%s1 + $0x38] sm:$0xff]
        %v210 = vld [vmem:[%s1 + $0x40] sm:$0xff]
        %v211 = vld [vmem:[%s1 + $0x48] sm:$0xff]
        %v212 = vld [vmem:[%s1 + $0x50] sm:$0xff]
        %v213 = vld [vmem:[%s1 + $0x58] sm:$0xff]
        %v214 = vld [vmem:[%s1 + $0x60] sm:$0xff]
        %v215 = vld [vmem:[%s1 + $0x68] sm:$0xff]
        %v216 = vld [vmem:[%s1 + $0x70] sm:$0xff]
        %v217 = vld [vmem:[%s1 + $0x78] sm:$0xff]
        %vm218 = vcmask 64512
        %v220 = vsel %vm218, %v202, 0
        %v223 = vsel %vm218, %v203, 0
        %v226 = vsel %vm218, %v204, 0
        %v229 = vsel %vm218, %v205, 0
        %v232 = vsel %vm218, %v206, 0
        %v235 = vsel %vm218, %v207, 0
        %v238 = vsel %vm218, %v208, 0
        %v241 = vsel %vm218, %v209, 0
        %v244 = vsel %vm218, %v210, 0
        %v247 = vsel %vm218, %v211, 0
        %v250 = vsel %vm218, %v212, 0
        %v253 = vsel %vm218, %v213, 0
        %v256 = vsel %vm218, %v214, 0
        %v259 = vsel %vm218, %v215, 0
        %v262 = vsel %vm218, %v216, 0
        %v265 = vsel %vm218, %v217, 0
        %267 = vmatprep.subr.mxu0 0.0
        %268 = vmatpush1.msra.mxu0 0.0
        %269 = vmatprep.subr.mxu0 0.0
        %270 = vmatpush1.msra.mxu0 0.0
        %271 = vmatprep.subr.mxu0 0.0
        %272 = vmatpush1.msra.mxu0 0.0
        %273 = vmatprep.subr.mxu0 0.0
        %274 = vmatpush1.msra.mxu0 0.0
        %275 = vmatprep.subr.mxu0 0.0
        %276 = vmatpush1.msra.mxu0 0.0
        %277 = vmatprep.subr.mxu0 0.0
        %278 = vmatpush1.msra.mxu0 0.0
        %279 = vmatprep.subr.mxu0 0.0
        %280 = vmatpush1.msra.mxu0 0.0
        %281 = vmatprep.subr.mxu0 0.0
        %282 = vmatpush1.msra.mxu0 0.0
        %283 = vmatprep.subr.mxu0 0.0
        %284 = vmatpush1.msra.mxu0 0.0
        %285 = vmatprep.subr.mxu0 0.0
        %286 = vmatpush1.msra.mxu0 0.0
        %287 = vmatprep.subr.mxu0 0.0
        %288 = vmatpush1.msra.mxu0 0.0
        %289 = vmatprep.subr.mxu0 0.0
        %290 = vmatpush1.msra.mxu0 0.0
        %291 = vmatprep.subr.mxu0 0.0
        %292 = vmatpush1.msra.mxu0 0.0
        %293 = vmatprep.subr.mxu0 0.0
        %294 = vmatpush1.msra.mxu0 0.0
        %295 = vmatprep.subr.mxu0 0.0
        %296 = vmatpush1.msra.mxu0 0.0
        %297 = vmatprep.subr.mxu0 %v201
        %298 = vmatpush1.msra.mxu0 %v200
        %299 = vmatprep.subr.mxu0 0.0
        %300 = vmatpush2.msra.mxu0 0.0
        %301 = vmatprep.subr.mxu0 0.0
        %302 = vmatpush2.msra.mxu0 0.0
        %303 = vmatprep.subr.mxu0 0.0
        %304 = vmatpush2.msra.mxu0 0.0
        %305 = vmatprep.subr.mxu0 0.0
        %306 = vmatpush2.msra.mxu0 0.0
        %307 = vmatprep.subr.mxu0 0.0
        %308 = vmatpush2.msra.mxu0 0.0
        %309 = vmatprep.subr.mxu0 0.0
        %310 = vmatpush2.msra.mxu0 0.0
        %311 = vmatprep.subr.mxu0 0.0
        %312 = vmatpush2.msra.mxu0 0.0
        %313 = vmatprep.subr.mxu0 0.0
        %314 = vmatpush2.msra.mxu0 0.0
        %315 = vmatprep.subr.mxu0 0.0
        %316 = vmatpush2.msra.mxu0 0.0
        %317 = vmatprep.subr.mxu0 0.0
        %318 = vmatpush2.msra.mxu0 0.0
        %319 = vmatprep.subr.mxu0 0.0
        %320 = vmatpush2.msra.mxu0 0.0
        %321 = vmatprep.subr.mxu0 0.0
        %322 = vmatpush2.msra.mxu0 0.0
        %323 = vmatprep.subr.mxu0 0.0
        %324 = vmatpush2.msra.mxu0 0.0
        %325 = vmatprep.subr.mxu0 0.0
        %326 = vmatpush2.msra.mxu0 0.0
        %327 = vmatprep.subr.mxu0 0.0
        %328 = vmatpush2.msra.mxu0 0.0
        %329 = vmatprep.subr.mxu0 0.0
        %330 = vmatpush2.msra.mxu0 0.0
        %331 = vmatprep.mubr.f32.mxu0 0.0
        %332 = vmatmul.mubr.f32.gmra.mxu0 %v220
        %v333 = vpop.f32.mrf.mxu0
        %v334 = vadd.f32 0.0, %v333
        %v335 = vpop.f32.mrf.mxu0
        %v336 = vadd.f32 0.0, %v335
        %337 = vmatprep.mubr.f32.mxu0 0.0
        %338 = vmatmul.mubr.f32.gmra.mxu0 %v223
        %v339 = vpop.f32.mrf.mxu0
        %v340 = vadd.f32 0.0, %v339
        %v341 = vpop.f32.mrf.mxu0
        %v342 = vadd.f32 0.0, %v341
        %343 = vmatprep.mubr.f32.mxu0 0.0
        %344 = vmatmul.mubr.f32.gmra.mxu0 %v226
        %v345 = vpop.f32.mrf.mxu0
        %v346 = vadd.f32 0.0, %v345
        %v347 = vpop.f32.mrf.mxu0
        %v348 = vadd.f32 0.0, %v347
        %349 = vmatprep.mubr.f32.mxu0 0.0
        %350 = vmatmul.mubr.f32.gmra.mxu0 %v229
        %v351 = vpop.f32.mrf.mxu0
        %v352 = vadd.f32 0.0, %v351
        %v353 = vpop.f32.mrf.mxu0
        %v354 = vadd.f32 0.0, %v353
        %355 = vmatprep.mubr.f32.mxu0 0.0
        %356 = vmatmul.mubr.f32.gmra.mxu0 %v232
        %v357 = vpop.f32.mrf.mxu0
        %v358 = vadd.f32 0.0, %v357
        %v359 = vpop.f32.mrf.mxu0
        %v360 = vadd.f32 0.0, %v359
        %361 = vmatprep.mubr.f32.mxu0 0.0
        %362 = vmatmul.mubr.f32.gmra.mxu0 %v235
        %v363 = vpop.f32.mrf.mxu0
        %v364 = vadd.f32 0.0, %v363
        %v365 = vpop.f32.mrf.mxu0
        %v366 = vadd.f32 0.0, %v365
        %367 = vmatprep.mubr.f32.mxu0 0.0
        %368 = vmatmul.mubr.f32.gmra.mxu0 %v238
        %v369 = vpop.f32.mrf.mxu0
        %v370 = vadd.f32 0.0, %v369
        %v371 = vpop.f32.mrf.mxu0
        %v372 = vadd.f32 0.0, %v371
        %373 = vmatprep.mubr.f32.mxu0 0.0
        %374 = vmatmul.mubr.f32.gmra.mxu0 %v241
        %v375 = vpop.f32.mrf.mxu0
        %v376 = vadd.f32 0.0, %v375
        %v377 = vpop.f32.mrf.mxu0
        %v378 = vadd.f32 0.0, %v377
        %379 = vmatprep.mubr.f32.mxu0 0.0
        %380 = vmatmul.mubr.f32.gmra.mxu0 %v244
        %v381 = vpop.f32.mrf.mxu0
        %v382 = vadd.f32 0.0, %v381
        %v383 = vpop.f32.mrf.mxu0
        %v384 = vadd.f32 0.0, %v383
        %385 = vmatprep.mubr.f32.mxu0 0.0
        %386 = vmatmul.mubr.f32.gmra.mxu0 %v247
        %v387 = vpop.f32.mrf.mxu0
        %v388 = vadd.f32 0.0, %v387
        %v389 = vpop.f32.mrf.mxu0
        %v390 = vadd.f32 0.0, %v389
        %391 = vmatprep.mubr.f32.mxu0 0.0
        %392 = vmatmul.mubr.f32.gmra.mxu0 %v250
        %v393 = vpop.f32.mrf.mxu0
        %v394 = vadd.f32 0.0, %v393
        %v395 = vpop.f32.mrf.mxu0
        %v396 = vadd.f32 0.0, %v395
        %397 = vmatprep.mubr.f32.mxu0 0.0
        %398 = vmatmul.mubr.f32.gmra.mxu0 %v253
        %v399 = vpop.f32.mrf.mxu0
        %v400 = vadd.f32 0.0, %v399
        %v401 = vpop.f32.mrf.mxu0
        %v402 = vadd.f32 0.0, %v401
        %403 = vmatprep.mubr.f32.mxu0 0.0
        %404 = vmatmul.mubr.f32.gmra.mxu0 %v256
        %v405 = vpop.f32.mrf.mxu0
        %v406 = vadd.f32 0.0, %v405
        %v407 = vpop.f32.mrf.mxu0
        %v408 = vadd.f32 0.0, %v407
        %409 = vmatprep.mubr.f32.mxu0 0.0
        %410 = vmatmul.mubr.f32.gmra.mxu0 %v259
        %v411 = vpop.f32.mrf.mxu0
        %v412 = vadd.f32 0.0, %v411
        %v413 = vpop.f32.mrf.mxu0
        %v414 = vadd.f32 0.0, %v413
        %415 = vmatprep.mubr.f32.mxu0 0.0
        %416 = vmatmul.mubr.f32.gmra.mxu0 %v262
        %v417 = vpop.f32.mrf.mxu0
        %v418 = vadd.f32 0.0, %v417
        %v419 = vpop.f32.mrf.mxu0
        %v420 = vadd.f32 0.0, %v419
        %421 = vmatprep.mubr.f32.mxu0 0.0
        %422 = vmatmul.mubr.f32.gmra.mxu0 %v265
        %v423 = vpop.f32.mrf.mxu0
        %v424 = vadd.f32 0.0, %v423
        %v425 = vpop.f32.mrf.mxu0
        %v426 = vadd.f32 0.0, %v425
        %427 = vdwg.mxu0
        %v428 = vxor.u32 %v334, 2147483648
        %v429 = vxor.u32 %v336, 2147483648
        %v430 = vxor.u32 %v340, 2147483648
        %v431 = vxor.u32 %v342, 2147483648
        %v432 = vxor.u32 %v346, 2147483648
        %v433 = vxor.u32 %v348, 2147483648
        %v434 = vxor.u32 %v352, 2147483648
        %v435 = vxor.u32 %v354, 2147483648
        %v436 = vxor.u32 %v358, 2147483648
        %v437 = vxor.u32 %v360, 2147483648
        %v438 = vxor.u32 %v364, 2147483648
        %v439 = vxor.u32 %v366, 2147483648
        %v440 = vxor.u32 %v370, 2147483648
        %v441 = vxor.u32 %v372, 2147483648
        %v442 = vxor.u32 %v376, 2147483648
        %v443 = vxor.u32 %v378, 2147483648
        %v444 = vxor.u32 %v382, 2147483648
        %v445 = vxor.u32 %v384, 2147483648
        %v446 = vxor.u32 %v388, 2147483648
        %v447 = vxor.u32 %v390, 2147483648
        %v448 = vxor.u32 %v394, 2147483648
        %v449 = vxor.u32 %v396, 2147483648
        %v450 = vxor.u32 %v400, 2147483648
        %v451 = vxor.u32 %v402, 2147483648
        %v452 = vxor.u32 %v406, 2147483648
        %v453 = vxor.u32 %v408, 2147483648
        %v454 = vxor.u32 %v412, 2147483648
        %v455 = vxor.u32 %v414, 2147483648
        %v456 = vxor.u32 %v418, 2147483648
        %v457 = vxor.u32 %v420, 2147483648
        %v458 = vxor.u32 %v424, 2147483648
        %v459 = vxor.u32 %v426, 2147483648
        %v460 = vmul.f32 %v428, 1.442695
        %v461 = vpow.pop %v460
        %v462 = vmul.f32 %v429, 1.442695
        %v463 = vpow.pop %v462
        %v464 = vmul.f32 %v430, 1.442695
        %v465 = vpow.pop %v464
        %v466 = vmul.f32 %v431, 1.442695
        %v467 = vpow.pop %v466
        %v468 = vmul.f32 %v432, 1.442695
        %v469 = vpow.pop %v468
        %v470 = vmul.f32 %v433, 1.442695
        %v471 = vpow.pop %v470
        %v472 = vmul.f32 %v434, 1.442695
        %v473 = vpow.pop %v472
        %v474 = vmul.f32 %v435, 1.442695
        %v475 = vpow.pop %v474
        %v476 = vmul.f32 %v436, 1.442695
        %v477 = vpow.pop %v476
        %v478 = vmul.f32 %v437, 1.442695
        %v479 = vpow.pop %v478
        %v480 = vmul.f32 %v438, 1.442695
        %v481 = vpow.pop %v480
        %v482 = vmul.f32 %v439, 1.442695
        %v483 = vpow.pop %v482
        %v484 = vmul.f32 %v440, 1.442695
        %v485 = vpow.pop %v484
        %v486 = vmul.f32 %v441, 1.442695
        %v487 = vpow.pop %v486
        %v488 = vmul.f32 %v442, 1.442695
        %v489 = vpow.pop %v488
        %v490 = vmul.f32 %v443, 1.442695
        %v491 = vpow.pop %v490
        %v492 = vmul.f32 %v444, 1.442695
        %v493 = vpow.pop %v492
        %v494 = vmul.f32 %v445, 1.442695
        %v495 = vpow.pop %v494
        %v496 = vmul.f32 %v446, 1.442695
        %v497 = vpow.pop %v496
        %v498 = vmul.f32 %v447, 1.442695
        %v499 = vpow.pop %v498
        %v500 = vmul.f32 %v448, 1.442695
        %v501 = vpow.pop %v500
        %v502 = vmul.f32 %v449, 1.442695
        %v503 = vpow.pop %v502
        %v504 = vmul.f32 %v450, 1.442695
        %v505 = vpow.pop %v504
        %v506 = vmul.f32 %v451, 1.442695
        %v507 = vpow.pop %v506
        %v508 = vmul.f32 %v452, 1.442695
        %v509 = vpow.pop %v508
        %v510 = vmul.f32 %v453, 1.442695
        %v511 = vpow.pop %v510
        %v512 = vmul.f32 %v454, 1.442695
        %v513 = vpow.pop %v512
        %v514 = vmul.f32 %v455, 1.442695
        %v515 = vpow.pop %v514
        %v516 = vmul.f32 %v456, 1.442695
        %v517 = vpow.pop %v516
        %v518 = vmul.f32 %v457, 1.442695
        %v519 = vpow.pop %v518
        %v520 = vmul.f32 %v458, 1.442695
        %v521 = vpow.pop %v520
        %v522 = vmul.f32 %v459, 1.442695
        %v523 = vpow.pop %v522
        %v524 = vadd.f32 %v461, 1.0
        %v525 = vadd.f32 %v463, 1.0
        %v526 = vadd.f32 %v465, 1.0
        %v527 = vadd.f32 %v467, 1.0
        %v528 = vadd.f32 %v469, 1.0
        %v529 = vadd.f32 %v471, 1.0
        %v530 = vadd.f32 %v473, 1.0
        %v531 = vadd.f32 %v475, 1.0
        %v532 = vadd.f32 %v477, 1.0
        %v533 = vadd.f32 %v479, 1.0
        %v534 = vadd.f32 %v481, 1.0
        %v535 = vadd.f32 %v483, 1.0
        %v536 = vadd.f32 %v485, 1.0
        %v537 = vadd.f32 %v487, 1.0
        %v538 = vadd.f32 %v489, 1.0
        %v539 = vadd.f32 %v491, 1.0
        %v540 = vadd.f32 %v493, 1.0
        %v541 = vadd.f32 %v495, 1.0
        %v542 = vadd.f32 %v497, 1.0
        %v543 = vadd.f32 %v499, 1.0
        %v544 = vadd.f32 %v501, 1.0
        %v545 = vadd.f32 %v503, 1.0
        %v546 = vadd.f32 %v505, 1.0
        %v547 = vadd.f32 %v507, 1.0
        %v548 = vadd.f32 %v509, 1.0
        %v549 = vadd.f32 %v511, 1.0
        %v550 = vadd.f32 %v513, 1.0
        %v551 = vadd.f32 %v515, 1.0
        %v552 = vadd.f32 %v517, 1.0
        %v553 = vadd.f32 %v519, 1.0
        %v554 = vadd.f32 %v521, 1.0
        %v555 = vadd.f32 %v523, 1.0
        %v556 = vrcp.pop %v524
        %v557 = vmul.f32 1.0, %v556
        %v558 = vrcp.pop %v525
        %v559 = vmul.f32 1.0, %v558
        %v560 = vrcp.pop %v526
        %v561 = vmul.f32 1.0, %v560
        %v562 = vrcp.pop %v527
        %v563 = vmul.f32 1.0, %v562
        %v564 = vrcp.pop %v528
        %v565 = vmul.f32 1.0, %v564
        %v566 = vrcp.pop %v529
        %v567 = vmul.f32 1.0, %v566
        %v568 = vrcp.pop %v530
        %v569 = vmul.f32 1.0, %v568
        %v570 = vrcp.pop %v531
        %v571 = vmul.f32 1.0, %v570
        %v572 = vrcp.pop %v532
        %v573 = vmul.f32 1.0, %v572
        %v574 = vrcp.pop %v533
        %v575 = vmul.f32 1.0, %v574
        %v576 = vrcp.pop %v534
        %v577 = vmul.f32 1.0, %v576
        %v578 = vrcp.pop %v535
        %v579 = vmul.f32 1.0, %v578
        %v580 = vrcp.pop %v536
        %v581 = vmul.f32 1.0, %v580
        %v582 = vrcp.pop %v537
        %v583 = vmul.f32 1.0, %v582
        %v584 = vrcp.pop %v538
        %v585 = vmul.f32 1.0, %v584
        %v586 = vrcp.pop %v539
        %v587 = vmul.f32 1.0, %v586
        %v588 = vrcp.pop %v540
        %v589 = vmul.f32 1.0, %v588
        %v590 = vrcp.pop %v541
        %v591 = vmul.f32 1.0, %v590
        %v592 = vrcp.pop %v542
        %v593 = vmul.f32 1.0, %v592
        %v594 = vrcp.pop %v543
        %v595 = vmul.f32 1.0, %v594
        %v596 = vrcp.pop %v544
        %v597 = vmul.f32 1.0, %v596
        %v598 = vrcp.pop %v545
        %v599 = vmul.f32 1.0, %v598
        %v600 = vrcp.pop %v546
        %v601 = vmul.f32 1.0, %v600
        %v602 = vrcp.pop %v547
        %v603 = vmul.f32 1.0, %v602
        %v604 = vrcp.pop %v548
        %v605 = vmul.f32 1.0, %v604
        %v606 = vrcp.pop %v549
        %v607 = vmul.f32 1.0, %v606
        %v608 = vrcp.pop %v550
        %v609 = vmul.f32 1.0, %v608
        %v610 = vrcp.pop %v551
        %v611 = vmul.f32 1.0, %v610
        %v612 = vrcp.pop %v552
        %v613 = vmul.f32 1.0, %v612
        %v614 = vrcp.pop %v553
        %v615 = vmul.f32 1.0, %v614
        %v616 = vrcp.pop %v554
        %v617 = vmul.f32 1.0, %v616
        %v618 = vrcp.pop %v555
        %v619 = vmul.f32 1.0, %v618
        %v620 = vld [vmem:[%s2] sm:$0x1]
        %s621 = sld [smem:[#allocation2]]
        %v622 = vstv %s621
        %623 = vmatprep.subr.mxu0 %v619
        %624 = vmatpush1.msra.mxu0 %v617
        %625 = vmatprep.subr.mxu0 %v615
        %626 = vmatpush1.msra.mxu0 %v613
        %627 = vmatprep.subr.mxu0 %v611
        %628 = vmatpush1.msra.mxu0 %v609
        %629 = vmatprep.subr.mxu0 %v607
        %630 = vmatpush1.msra.mxu0 %v605
        %631 = vmatprep.subr.mxu0 %v603
        %632 = vmatpush1.msra.mxu0 %v601
        %633 = vmatprep.subr.mxu0 %v599
        %634 = vmatpush1.msra.mxu0 %v597
        %635 = vmatprep.subr.mxu0 %v595
        %636 = vmatpush1.msra.mxu0 %v593
        %637 = vmatprep.subr.mxu0 %v591
        %638 = vmatpush1.msra.mxu0 %v589
        %639 = vmatprep.subr.mxu0 %v587
        %640 = vmatpush1.msra.mxu0 %v585
        %641 = vmatprep.subr.mxu0 %v583
        %642 = vmatpush1.msra.mxu0 %v581
        %643 = vmatprep.subr.mxu0 %v579
        %644 = vmatpush1.msra.mxu0 %v577
        %645 = vmatprep.subr.mxu0 %v575
        %646 = vmatpush1.msra.mxu0 %v573
        %647 = vmatprep.subr.mxu0 %v571
        %648 = vmatpush1.msra.mxu0 %v569
        %649 = vmatprep.subr.mxu0 %v567
        %650 = vmatpush1.msra.mxu0 %v565
        %651 = vmatprep.subr.mxu0 %v563
        %652 = vmatpush1.msra.mxu0 %v561
        %653 = vmatprep.subr.mxu0 %v559
        %654 = vmatpush1.msra.mxu0 %v557
        %655 = vmatprep.subr.mxu0 0.0
        %656 = vmatpush2.msra.mxu0 0.0
        %657 = vmatprep.subr.mxu0 0.0
        %658 = vmatpush2.msra.mxu0 0.0
        %659 = vmatprep.subr.mxu0 0.0
        %660 = vmatpush2.msra.mxu0 0.0
        %661 = vmatprep.subr.mxu0 0.0
        %662 = vmatpush2.msra.mxu0 0.0
        %663 = vmatprep.subr.mxu0 0.0
        %664 = vmatpush2.msra.mxu0 0.0
        %665 = vmatprep.subr.mxu0 0.0
        %666 = vmatpush2.msra.mxu0 0.0
        %667 = vmatprep.subr.mxu0 0.0
        %668 = vmatpush2.msra.mxu0 0.0
        %669 = vmatprep.subr.mxu0 0.0
        %670 = vmatpush2.msra.mxu0 0.0
        %671 = vmatprep.subr.mxu0 0.0
        %672 = vmatpush2.msra.mxu0 0.0
        %673 = vmatprep.subr.mxu0 0.0
        %674 = vmatpush2.msra.mxu0 0.0
        %675 = vmatprep.subr.mxu0 0.0
        %676 = vmatpush2.msra.mxu0 0.0
        %677 = vmatprep.subr.mxu0 0.0
        %678 = vmatpush2.msra.mxu0 0.0
        %679 = vmatprep.subr.mxu0 0.0
        %680 = vmatpush2.msra.mxu0 0.0
        %681 = vmatprep.subr.mxu0 0.0
        %682 = vmatpush2.msra.mxu0 0.0
        %683 = vmatprep.subr.mxu0 0.0
        %684 = vmatpush2.msra.mxu0 0.0
        %685 = vmatprep.subr.mxu0 0.0
        %686 = vmatpush2.msra.mxu0 0.0
        %687 = vmatprep.mubr.f32.mxu0 0.0
        %688 = vmatmul.mubr.f32.gmra.mxu0 %v620
        %v689 = vpop.f32.mrf.mxu0
        %v690 = vadd.f32 %v622, %v689
        %v691 = vpop.f32.mrf.mxu0
        %v692 = vadd.f32 %v622, %v691
        %693 = vdwg.mxu0
        %v696 = vcombine.low %v690, %v692
        %v698 = vunpack.c.l.s4 1966171168
        %v699 = vunpack.c.0.s8 %v698
        %v700 = vlaneseq
        %v701 = vshrl.u32 %v700, 7
        %v702 = vsub.s32 %v699, %v701
        %v703 = vrot.slane %v696, %v702
        %v705 = vunpack.c.l.s4 1966171168
        %v706 = vunpack.c.0.s8 %v705
        %v707 = vlaneseq
        %v708 = vshrl.u32 %v707, 7
        %v709 = vsub.s32 %v706, %v708
        %v710 = vrot.slane %v703, %v709
        %v712 = vlaneseq
        %vm713 = vcmp.ge.s32.totalorder %v712, 0
        %vm714 = vcmp.lt.s32.totalorder %v712, 256
        %vm715 = vmand %vm713, %vm714
        %716 = vst.msk [vmem:[%s192] sm:$0x3] %vm715, %v710
        %s717 = sand.u32 %s116, 1
        %s718 = scalar_lea.sflag [#allocation4], %s717
        %s719 = sand.u32 %s116, 1
        %s720 = smul.addr %s719, 2
        %s721 = scalar_lea.vmem [#allocation3], %s720
        // Predicated region
        $region37: #{ann_forward.1} parent=35 // pred_check
          %p722 = pneg %p126
        $region38: #{ann_forward.1} parent=35 // pred_check_branch
          %724 = sbr.rel (%p722) target = $region40
        $region39: #{ann_forward.1} parent=35 // pred_region
          %s725 = smul.u32 2, %s19
          %s727 = ssub.s32 32, 32
          %728 = vsyncadd %s718, %s727
          %s729 = smul.addr %s725, 16
          %s730 = scalar_lea.hbm %s4, %s729
          %s732 = sshll.u32 %s721, 4
          %s733 = int_to_ptr.vmem [resolvable:$true] %s732
          %735 = dma.vmem_to_hbm [thread:$0]  %s733, 32, %s730, %s718
        $region40: #{ann_forward.1} parent=35 // pred_fallthru
          _
      $region36: #{ann_forward.1} parent=5 // pred_fallthru
        _
      %p736 = scmp.le.s32.totalorder 2, %s14
      // Predicated region
      $region41: #{ann_forward.1} parent=5 // pred_check
        %p737 = pneg %p736
      $region42: #{ann_forward.1} parent=5 // pred_check_branch
        %739 = sbr.rel (%p737) target = $region44
      $region43: #{ann_forward.1} parent=5 // pred_region
        %s740 = ssub.s32 %s14, 2
        // Predicated region
        $region45: #{ann_forward.1} parent=43 // pred_check
          %p741 = pneg %p132
        $region46: #{ann_forward.1} parent=43 // pred_check_branch
          %743 = sbr.rel (%p741) target = $region48
        $region47: #{ann_forward.1} parent=43 // pred_region
          %s744 = sand.u32 %s117, 1
          %s745 = scalar_lea.sflag [#allocation4], %s744
          %s746 = sand.u32 %s117, 1
          %s747 = smul.addr %s746, 2
          %s748 = scalar_lea.vmem [#allocation3], %s747
          %749 = dma.done %s745, 32
        $region48: #{ann_forward.1} parent=43 // pred_fallthru
          _
      $region44: #{ann_forward.1} parent=5 // pred_fallthru
        _
    $region6: #{ann_forward.1} parent=1 // loop_footer
      %s18 = sadd.s32 1, %s14
    $region7: #{ann_forward.1} parent=1 // loop_footer_branch
      %13 = sbr.rel target = $region3
    $region8: #{ann_forward.1} parent=1 // loop_exit
      _
    %750 = vsyncpa [#allocation4], 1
    %s751 = scalar_lea.sflag [#allocation4], 1
    %752 = vsyncpa %s751, 1

</llo_original>
